<compile_context>
chip_gen: v7x
topology: tpu7x:2x2x1
jax: 0.10.0
libtpu: 0.0.40
codegen_flags: <defaults>
</compile_context>

<pallas_src>
import jax
import jax.numpy as jnp
from jax import lax
from jax.experimental import pallas as pl
from jax.experimental.pallas import tpu as pltpu

EPS = 1e-5

# MXU operand dtype.  bf16 is MXU peak on v5e/v6e/v7x; accumulation stays f32.
MATMUL_DTYPE = jnp.bfloat16
# HBM dtype of the stage-1 intermediate (halves that round trip's bytes).
Y_DTYPE = MATMUL_DTYPE

# Leading "parallel" axis size for the reduction passes (v7x megacore).
NCORES = 2


# ---------------------------------------------------------------------------
# Kernels
# ---------------------------------------------------------------------------

def _stats_kernel(x_ref, s_ref):
    """Pass 1: accumulate per-channel [sum; sum_sq] of x over row blocks.
    Grid = (core, row_block); each core owns its own (1, 2, C) stat slice."""
    @pl.when(pl.program_id(1) == 0)
    def _():
        s_ref[...] = jnp.zeros_like(s_ref)

    x = x_ref[...].astype(jnp.float32)                      # (TM, Cin)
    ssum = jnp.sum(x, axis=0, keepdims=True)                # (1, Cin)
    ssq = jnp.sum(x * x, axis=0, keepdims=True)             # (1, Cin)
    s_ref[...] += jnp.concatenate([ssum, ssq], axis=0).reshape(1, 2, x.shape[1])


def _stage1_kernel(x_ref, sc1_ref, sh1_ref, w1_ref, y_ref, s2_ref):
    """Pass 2: y = conv1x1(relu(bn1(x))) for one row block, plus bn2-stat
    accumulation of y.  bn1 is a pre-folded per-channel scale/shift."""
    @pl.when(pl.program_id(1) == 0)
    def _():
        s2_ref[...] = jnp.zeros_like(s2_ref)

    x = x_ref[...].astype(jnp.float32)                      # (TM, Cin)
    h = jnp.maximum(x * sc1_ref[...] + sh1_ref[...], 0.0)   # bn1 + relu (f32)
    y = jnp.dot(h.astype(MATMUL_DTYPE), w1_ref[...],
                preferred_element_type=jnp.float32)         # (TM, C4), MXU bf16
    y_ref[...] = y.astype(y_ref.dtype)                      # bf16 to HBM

    ssum = jnp.sum(y, axis=0, keepdims=True)                # (1, C4)
    ssq = jnp.sum(y * y, axis=0, keepdims=True)             # (1, C4)
    s2_ref[...] += jnp.concatenate([ssum, ssq], axis=0).reshape(1, 2, y.shape[1])


def _stage2_kernel(y_ref, x_ref, sc2_ref, sh2_ref, w2_ref, out_ref, pad_ref):
    """Pass 3 (per batch element): bn2 -> relu -> 3x3 conv -> concat with x.

    Zero-padding lives in a VMEM scratch (only the 1-pixel border is zeroed
    each step; the interior is fully overwritten).  The 3x3 conv is nine
    accumulating matmuls (one per tap) against (C4, G) weight slices, and the
    residual concat is written as two direct channel-range stores.
    """
    _, H, W, C4 = y_ref.shape
    G = w2_ref.shape[-1]

    # bn2 (pre-folded scale/shift) + relu, in f32.
    r = jnp.maximum(y_ref[0].astype(jnp.float32) * sc2_ref[...] + sh2_ref[...],
                    0.0)                                     # (H, W, C4)

    # Zero only the border.  Done every step: with a "parallel" batch axis each
    # TensorCore has its own scratch, so a one-shot program_id==0 init would
    # leave the second core's halo uninitialized.
    zrow = jnp.zeros((1, W + 2, C4), jnp.float32)
    zcol = jnp.zeros((H + 2, 1, C4), jnp.float32)
    pad_ref[0:1, :, :] = zrow
    pad_ref[H + 1:H + 2, :, :] = zrow
    pad_ref[:, 0:1, :] = zcol
    pad_ref[:, W + 1:W + 2, :] = zcol
    # TODO(synk): the offset-1 store along W is sublane-misaligned; a
    # pltpu.roll-based shift of the two side taps would avoid the masked store.
    pad_ref[1:H + 1, 1:W + 1, :] = r

    # 3x3 conv as nine accumulating matmuls (no 9x im2col materialization).
    acc = None
    for k in range(9):
        ky, kx = k // 3, k % 3
        tap = pad_ref[ky:ky + H, kx:kx + W, :].reshape(H * W, C4)
        d = jnp.dot(tap.astype(MATMUL_DTYPE), w2_ref[k],
                    preferred_element_type=jnp.float32)      # (H*W, G)
        acc = d if acc is None else acc + d
    conv = acc.reshape(H, W, G)

    # fused torch.cat([conv_out, x], channel): two direct lane-range stores.
    out_ref[0, :, :, :G] = conv.astype(out_ref.dtype)
    out_ref[0, :, :, G:] = x_ref[0].astype(out_ref.dtype)


# ---------------------------------------------------------------------------
# Wrapper helpers
# ---------------------------------------------------------------------------

def _split_rows(m, target=512, ncores=NCORES):
    """Pick (ncores, row_tile) so that row_tile is a multiple of 8, divides
    m // ncores, and is as large as possible (<= target)."""
    def pick(mm):
        for t in range(min(target, mm), 7, -1):
            if mm % t == 0 and t % 8 == 0:
                return t
        return None

    if ncores > 1 and m % ncores == 0:
        t = pick(m // ncores)
        if t is not None:
            return ncores, t
    t = pick(m)
    # TODO(synk): if M has awkward prime factors this falls back to a single
    # full-extent block (no pipelining); a masked remainder block would be
    # better for such shapes.
    return 1, (t if t is not None else m)


def _mosaic_params(sem, working_set_bytes):
    limit = int(min(max(2 * working_set_bytes, 32 << 20), 64 << 20))
    return pltpu.CompilerParams(dimension_semantics=sem,
                                vmem_limit_bytes=limit)


def _bn_fold(stats_per_core, gamma, beta, count):
    """Combine per-core stats and fold batch stats + affine params into a
    per-channel scale/shift (tiny, runs as plain XLA)."""
    stats = jnp.sum(stats_per_core.astype(jnp.float32), axis=0)     # (2, C)
    mean = stats[0] / count
    # TODO(synk): shifted / Welford-style accumulation for very large M.
    var = jnp.maximum(stats[1] / count - mean * mean, 0.0)
    scale = gamma * lax.rsqrt(var + EPS)
    shift = beta - mean * scale
    c = gamma.shape[0]
    return (scale.reshape(1, c).astype(jnp.float32),
            shift.reshape(1, c).astype(jnp.float32))


# ---------------------------------------------------------------------------
# Forward
# ---------------------------------------------------------------------------

def bottleneck_forward(x_nchw, params):
    """params = (gamma1, beta1, w1, gamma2, beta2, w2) with PyTorch shapes:
       gamma1/beta1: (Cin,)   w1: (4g, Cin, 1, 1)
       gamma2/beta2: (4g,)    w2: (g, 4g, 3, 3)
    Returns NCHW output of shape (N, g + Cin, H, W)."""
    g1, b1, w1, g2, b2, w2 = params
    N, Cin, H, W = x_nchw.shape
    C4 = w1.shape[0]
    G = w2.shape[0]
    M = N * H * W

    # Boundary layout change only (kernels are NHWC end-to-end).
    x_nhwc = jnp.transpose(x_nchw, (0, 2, 3, 1)).astype(jnp.float32)
    x2d = x_nhwc.reshape(M, Cin)                                   # free reshape

    w1_t = jnp.transpose(w1.reshape(C4, Cin), (1, 0)).astype(MATMUL_DTYPE)
    # merged 3x3 weight: w2_m[ky*3+kx, c, g] = w2[g, c, ky, kx]
    w2_m = jnp.transpose(w2, (2, 3, 1, 0)).reshape(9, C4, G).astype(MATMUL_DTYPE)

    ncores, TM = _split_rows(M)
    blocks_per_core = M // (TM * ncores)

    mm_b = jnp.dtype(MATMUL_DTYPE).itemsize
    y_b = jnp.dtype(Y_DTYPE).itemsize

    # ---- pass 1: bn1 statistics over all of x --------------------------------
    ws1 = 2 * TM * Cin * 4 + 2 * ncores * 2 * Cin * 4
    stats1 = pl.pallas_call(
        _stats_kernel,
        out_shape=jax.ShapeDtypeStruct((ncores, 2, Cin), jnp.float32),
        grid=(ncores, blocks_per_core),
        in_specs=[pl.BlockSpec((TM, Cin),
                               lambda c, r: (c * blocks_per_core + r, 0))],
        out_specs=pl.BlockSpec((1, 2, Cin), lambda c, r: (c, 0, 0)),
        compiler_params=_mosaic_params(("parallel", "arbitrary"), ws1),
        cost_estimate=pl.CostEstimate(
            flops=int(3 * M * Cin), transcendentals=0,
            bytes_accessed=int(4 * (M * Cin + 2 * Cin))),
    )(x2d)

    scale1, shift1 = _bn_fold(stats1, g1, b1, M)

    # ---- pass 2: bn1 -> relu -> conv1x1, accumulate bn2 statistics -----------
    # TODO(synk): pipeline_mode=pl.Buffered(1) on the grid-invariant weight /
    # scale blocks would reclaim their second VMEM buffer (matters on v7x).
    ws2 = (2 * TM * Cin * 4 + 2 * TM * C4 * y_b + 2 * Cin * C4 * mm_b
           + 2 * ncores * 2 * C4 * 4 + 4 * Cin * 4)
    y2d, stats2 = pl.pallas_call(
        _stage1_kernel,
        out_shape=(jax.ShapeDtypeStruct((M, C4), Y_DTYPE),
                   jax.ShapeDtypeStruct((ncores, 2, C4), jnp.float32)),
        grid=(ncores, blocks_per_core),
        in_specs=[pl.BlockSpec((TM, Cin),
                               lambda c, r: (c * blocks_per_core + r, 0)),
                  pl.BlockSpec((1, Cin), lambda c, r: (0, 0)),
                  pl.BlockSpec((1, Cin), lambda c, r: (0, 0)),
                  pl.BlockSpec((Cin, C4), lambda c, r: (0, 0))],
        out_specs=(pl.BlockSpec((TM, C4),
                                lambda c, r: (c * blocks_per_core + r, 0)),
                   pl.BlockSpec((1, 2, C4), lambda c, r: (c, 0, 0))),
        compiler_params=_mosaic_params(("parallel", "arbitrary"), ws2),
        cost_estimate=pl.CostEstimate(
            flops=int(2 * M * Cin * C4 + 6 * M * Cin + 4 * M * C4),
            transcendentals=0,
            bytes_accessed=int(4 * M * Cin + y_b * M * C4 + mm_b * Cin * C4
                               + 4 * (2 * Cin + 2 * C4))),
    )(x2d, scale1, shift1, w1_t)

    scale2, shift2 = _bn_fold(stats2, g2, b2, M)

    y4 = y2d.reshape(N, H, W, C4)                                  # free reshape

    # ---- pass 3: bn2 -> relu -> 3x3 conv -> concat with x --------------------
    # TODO(synk): for large H,W tile stage 2 into row bands with a 1-row halo
    # instead of a whole image per grid step (MNIST/CIFAR images are tiny).
    ws3 = (2 * H * W * (C4 * y_b + Cin * 4 + (G + Cin) * 4)
           + 2 * 9 * C4 * G * mm_b + (H + 2) * (W + 2) * C4 * 4)
    out_nhwc = pl.pallas_call(
        _stage2_kernel,
        out_shape=jax.ShapeDtypeStruct((N, H, W, G + Cin), jnp.float32),
        grid=(N,),
        in_specs=[pl.BlockSpec((1, H, W, C4), lambda n: (n, 0, 0, 0)),
                  pl.BlockSpec((1, H, W, Cin), lambda n: (n, 0, 0, 0)),
                  pl.BlockSpec((1, C4), lambda n: (0, 0)),
                  pl.BlockSpec((1, C4), lambda n: (0, 0)),
                  pl.BlockSpec((9, C4, G), lambda n: (0, 0, 0))],
        out_specs=pl.BlockSpec((1, H, W, G + Cin), lambda n: (n, 0, 0, 0)),
        scratch_shapes=[pltpu.VMEM((H + 2, W + 2, C4), jnp.float32)],
        compiler_params=_mosaic_params(("parallel",), ws3),
        cost_estimate=pl.CostEstimate(
            flops=int(2 * M * 9 * C4 * G + 4 * M * C4),
            transcendentals=0,
            bytes_accessed=int(y_b * M * C4 + 4 * M * Cin + mm_b * 9 * C4 * G
                               + 4 * M * (G + Cin) + 4 * 4 * C4)),
    )(y4, x_nhwc, scale2, shift2, w2_m)

    return jnp.transpose(out_nhwc, (0, 3, 1, 2))                   # NHWC -> NCHW


# ---------------------------------------------------------------------------
# Pure-JAX reference (mirrors the PyTorch module in training mode)
# ---------------------------------------------------------------------------

def _ref_forward(x, g1, b1, w1, g2, b2, w2):
    def bn_relu(t, g, b):
        m = t.mean(axis=(0, 2, 3), keepdims=True)
        v = t.var(axis=(0, 2, 3), keepdims=True)  # biased, like training BN
        return jnp.maximum((t - m) / jnp.sqrt(v + EPS) * g.reshape(1, -1, 1, 1)
                           + b.reshape(1, -1, 1, 1), 0.0)

    dn = ('NCHW', 'OIHW', 'NCHW')
    h = bn_relu(x, g1, b1)
    y = lax.conv_general_dilated(h, w1, (1, 1), 'VALID', dimension_numbers=dn)
    r = bn_relu(y, g2, b2)
    z = lax.conv_general_dilated(r, w2, (1, 1), [(1, 1), (1, 1)],
                                 dimension_numbers=dn)
    return jnp.concatenate([z, x], axis=1)


if __name__ == "__main__":
    key = jax.random.PRNGKey(0)
    N, Cin, H, W = 2, 8, 16, 16
    growth = 4
    C4 = 4 * growth

    k = jax.random.split(key, 7)
    x = jax.random.normal(k[0], (N, Cin, H, W), jnp.float32)
    g1 = 1.0 + 0.1 * jax.random.normal(k[1], (Cin,), jnp.float32)
    b1 = 0.1 * jax.random.normal(k[2], (Cin,), jnp.float32)
    w1 = 0.2 * jax.random.normal(k[3], (C4, Cin, 1, 1), jnp.float32)
    g2 = 1.0 + 0.1 * jax.random.normal(k[4], (C4,), jnp.float32)
    b2 = 0.1 * jax.random.normal(k[5], (C4,), jnp.float32)
    w2 = 0.2 * jax.random.normal(k[6], (growth, C4, 3, 3), jnp.float32)

    out = bottleneck_forward(x, (g1, b1, w1, g2, b2, w2))
    out = jax.block_until_ready(out)

    ref = _ref_forward(x, g1, b1, w1, g2, b2, w2)
    assert out.shape == (N, growth + Cin, H, W), out.shape
    err = float(jnp.max(jnp.abs(out - ref)))
    # bf16 MXU operands + bf16 intermediate => loosened tolerance vs f32.
    assert jnp.allclose(out, ref, atol=1e-1, rtol=1e-1), f"max abs err {err}"

    print("KERNEL_OK")
</pallas_src>

<mosaic_0001>
module attributes {stable_mosaic.version = 11 : i64} {
  func.func @_stats_kernel(%arg0: i32, %arg1: i32, %arg2: memref<256x8xf32, #tpu.memory_space<vmem>>, %arg3: memref<1x2x8xf32, #tpu.memory_space<vmem>>) attributes {dimension_semantics = [#tpu.dimension_semantics<parallel>, #tpu.dimension_semantics<arbitrary>], iteration_bounds = array<i64: 2, 1>, scalar_prefetch = 0 : i64, scratch_operands = 0 : i64, tpu.core_type = #tpu.core_type<tc>, window_params = [{transform_indices = @transform_0, window_bounds = array<i64: 256, 8>}, {transform_indices = @transform_1, window_bounds = array<i64: 1, 2, 8>}]} {
    %c0_i32 = arith.constant 0 : i32
    %0 = arith.cmpi eq, %arg1, %c0_i32 : i32
    %1 = arith.extui %0 : i1 to i32
    %c0_i32_0 = arith.constant 0 : i32
    %2 = arith.cmpi ne, %1, %c0_i32_0 : i32
    scf.if %2 {
      %cst_9 = arith.constant 0.000000e+00 : f32
      %14 = vector.broadcast %cst_9 : f32 to vector<1x2x8xf32>
      %c0_10 = arith.constant 0 : index
      %c0_11 = arith.constant 0 : index
      %c0_12 = arith.constant 0 : index
      %15 = vector.load %arg3[%c0_10, %c0_11, %c0_12] : memref<1x2x8xf32, #tpu.memory_space<vmem>>, vector<1x2x8xf32>
      tpu.vector_store %arg3[%c0_10, %c0_11, %c0_12], %14 {strides = array<i32>} : memref<1x2x8xf32, #tpu.memory_space<vmem>>, vector<1x2x8xf32>,
    } else {
    }
    %c0 = arith.constant 0 : index
    %c0_1 = arith.constant 0 : index
    %3 = vector.load %arg2[%c0, %c0_1] : memref<256x8xf32, #tpu.memory_space<vmem>>, vector<256x8xf32>
    %cst = arith.constant dense<0.000000e+00> : vector<8xf32>
    %4 = vector.multi_reduction <add>, %3, %cst [0] : vector<256x8xf32> to vector<8xf32>
    %5 = vector.shape_cast %4 : vector<8xf32> to vector<1x8xf32>
    %6 = arith.mulf %3, %3 : vector<256x8xf32>
    %cst_2 = arith.constant dense<0.000000e+00> : vector<8xf32>
    %7 = vector.multi_reduction <add>, %6, %cst_2 [0] : vector<256x8xf32> to vector<8xf32>
    %8 = vector.shape_cast %7 : vector<8xf32> to vector<1x8xf32>
    %c0_3 = arith.constant 0 : index
    %c0_4 = arith.constant 0 : index
    %c0_5 = arith.constant 0 : index
    %9 = vector.load %arg3[%c0_3, %c0_4, %c0_5] : memref<1x2x8xf32, #tpu.memory_space<vmem>>, vector<1x2x8xf32>
    %10 = tpu.concatenate %5, %8 in 0 : vector<1x8xf32>, vector<1x8xf32> -> vector<2x8xf32>
    %11 = vector.shape_cast %10 : vector<2x8xf32> to vector<1x2x8xf32>
    %12 = arith.addf %9, %11 : vector<1x2x8xf32>
    %c0_6 = arith.constant 0 : index
    %c0_7 = arith.constant 0 : index
    %c0_8 = arith.constant 0 : index
    %13 = vector.load %arg3[%c0_6, %c0_7, %c0_8] : memref<1x2x8xf32, #tpu.memory_space<vmem>>, vector<1x2x8xf32>
    tpu.vector_store %arg3[%c0_6, %c0_7, %c0_8], %12 {strides = array<i32>} : memref<1x2x8xf32, #tpu.memory_space<vmem>>, vector<1x2x8xf32>,
    return
  }
  func.func @transform_0(%arg0: i32, %arg1: i32) -> (i32, i32) {
    %c1_i32 = arith.constant 1 : i32
    %0 = arith.muli %arg0, %c1_i32 : i32
    %1 = arith.addi %0, %arg1 : i32
    %c0_i32 = arith.constant 0 : i32
    %c0_i32_0 = arith.constant 0 : i32
    return %1, %c0_i32 : i32, i32
  }
  func.func @transform_1(%arg0: i32, %arg1: i32) -> (i32, i32, i32) {
    %c0_i32 = arith.constant 0 : i32
    %c0_i32_0 = arith.constant 0 : i32
    %c0_i32_1 = arith.constant 0 : i32
    return %arg0, %c0_i32, %c0_i32_0 : i32, i32, i32
  }
}

</mosaic_0001>

<llo_original>
// kernel: tpu_custom_call.1
$region0: #{tpu_custom_call.1}
  #allocation0 [shape = 'u32[]', space=smem, size = 0x4, offset = 0x4, fixed_abs, tag = 'smem constant byte address 0x4 - core index']
  #allocation1 [shape = 'u32[144,128]{1,0:T(1,128)}', space=vmem, size = 0x12000, scoped, tag = 'internal scratch']
  %s0 = inlined_call_operand.vmem [shape: f32[512,8], index: 0, kind: input, shape index: {}]
  %s1 = inlined_call_operand.hbm [shape: f32[2,2,8], index: 1, kind: output, shape index: {}]
  %s2 = sld [smem:[#allocation0]]
  $region41: #{tpu_custom_call.1} parent=0
    _
  %s4 = ssub.s32 1, %s2
  %s5 = scalar_select 0, %s4, %s2
  $region1: #{tpu_custom_call.1} parent=0
    #allocation2 [shape = 'u8[2048]{0}', space=vmem, size = 0x800, scoped, tag = 'output window, operand 0']
    #allocation3 [shape = 's32[2]{0}', space=sflag, size = 0x8, scoped, tag = 'scoped memory for tpu_custom_call.1']
    %6 = vsyncpa [#allocation3], 0
    %s7 = scalar_lea.sflag [#allocation3], 1
    %8 = vsyncpa %s7, 0
    loop: start=0, step=1, limit=4
    $region2: #{tpu_custom_call.1} parent=1 // loop_pre_header
      _
    $region3: #{tpu_custom_call.1} parent=1 // loop_header
      %s10 = sphi 0, %s14
      %p11 = scmp.ge.s32.totalorder %s10, 4
      %s17 = sphi 0, %s29
      %s18 = sphi 0, %s25
      %s19 = sphi 0, %s17
      %s20 = sphi 0, %s18
      %s21 = sphi 0, %s19
      %s22 = sphi 0, %s20
      %s34 = sphi 0, %s36
      %s37 = sphi 0, %s34
      %s38 = sphi 0, %s37
      %s54 = sphi 0, %s38
      %s60 = sphi 0, %s62
      %s63 = sphi 0, %s60
      %s64 = sphi 0, %s63
      %s80 = sphi 0, %s64
    $region4: #{tpu_custom_call.1} parent=1 // loop_header_branch
      %13 = sbr.rel (%p11) target = $region8
    $region5: #{tpu_custom_call.1} parent=1 // loop_body
      %s15 = ssub.s32 %s10, 1
      %s16 = ssub.s32 %s10, 2
      %s23 = sadd.s32 1, %s18
      %p24 = scmp.ge.s32.totalorder %s23, 1
      %s25 = scalar_select %p24, 0, %s23
      %s26 = sadd.s32 1, %s17
      %s27 = scalar_select %p24, %s26, %s17
      %p28 = scmp.ge.s32.totalorder %s27, 2
      %s29 = scalar_select %p28, 0, %s27
      %s30 = sadd.s32 %s17, %s18
      %s31 = sadd.s32 %s29, %s25
      %s32 = ssub.s32 %s30, %s31
      %p33 = scmp.eq.s32.totalorder %s32, 0
      %s35 = sadd.s32 %s34, 1
      %s36 = scalar_select %p33, %s34, %s35
      %p39 = pneg %p33
      %p40 = scmp.eq.s32.totalorder %s10, 1
      %p41 = por %p39, %p40
      %p42 = scmp.ne.s32.totalorder %s34, %s37
      %p43 = scmp.eq.s32.totalorder %s10, 0
      %p44 = por %p42, %p43
      %p45 = scmp.ne.s32.totalorder %s34, %s37
      %p46 = scmp.eq.s32.totalorder %s15, 1
      %p47 = por %p45, %p46
      %p48 = scmp.ne.s32.totalorder %s37, %s38
      %p49 = scmp.eq.s32.totalorder %s15, 0
      %p50 = por %p48, %p49
      %p51 = scmp.ne.s32.totalorder %s37, %s38
      %p52 = scmp.eq.s32.totalorder %s16, 1
      %p53 = por %p51, %p52
      %p55 = scmp.ne.s32.totalorder %s38, %s54
      %p56 = scmp.eq.s32.totalorder %s16, 0
      %p57 = por %p55, %p56
      %s58 = ssub.s32 %s17, %s29
      %p59 = scmp.eq.s32.totalorder %s58, 0
      %s61 = sadd.s32 %s60, 1
      %s62 = scalar_select %p59, %s60, %s61
      %p65 = pneg %p59
      %p66 = scmp.eq.s32.totalorder %s10, 1
      %p67 = por %p65, %p66
      %p68 = scmp.ne.s32.totalorder %s60, %s63
      %p69 = scmp.eq.s32.totalorder %s10, 0
      %p70 = por %p68, %p69
      %p71 = scmp.ne.s32.totalorder %s60, %s63
      %p72 = scmp.eq.s32.totalorder %s15, 1
      %p73 = por %p71, %p72
      %p74 = scmp.ne.s32.totalorder %s63, %s64
      %p75 = scmp.eq.s32.totalorder %s15, 0
      %p76 = por %p74, %p75
      %p77 = scmp.ne.s32.totalorder %s63, %s64
      %p78 = scmp.eq.s32.totalorder %s16, 1
      %p79 = por %p77, %p78
      %p81 = scmp.ne.s32.totalorder %s64, %s80
      %p82 = scmp.eq.s32.totalorder %s16, 0
      %p83 = por %p81, %p82
      %p84 = scmp.le.s32.totalorder 1, %s10
      %p85 = scmp.lt.s32.totalorder %s10, 3
      %p86 = pnand %p84, %p85
      %p87 = pneg %p86
      // Predicated region
      $region9: #{tpu_custom_call.1} parent=5 // pred_check
        _
      $region10: #{tpu_custom_call.1} parent=5 // pred_check_branch
        %89 = sbr.rel (%p86) target = $region12
      $region11: #{tpu_custom_call.1} parent=5 // pred_region
        %s90 = ssub.s32 %s10, 1
      $region12: #{tpu_custom_call.1} parent=5 // pred_fallthru
        _
      %p91 = scmp.lt.s32.totalorder %s10, 2
      // Predicated region
      $region13: #{tpu_custom_call.1} parent=5 // pred_check
        %p92 = pneg %p91
      $region14: #{tpu_custom_call.1} parent=5 // pred_check_branch
        %94 = sbr.rel (%p92) target = $region16
      $region15: #{tpu_custom_call.1} parent=5 // pred_region
        // Predicated region
        $region17: #{tpu_custom_call.1} parent=15 // pred_check
          %p95 = pneg %p44
        $region18: #{tpu_custom_call.1} parent=15 // pred_check_branch
          %97 = sbr.rel (%p95) target = $region20
        $region19: #{tpu_custom_call.1} parent=15 // pred_region
          %s98 = sadd.s32 %s17, %s18
          %s99 = smul.u32 32, %s98
          %p100 = scmp.lt.s32.totalorder %s99, 63
          %s101 = scalar_select %p100, %s99, 63
          %s102 = smul.addr %s101, 8
          %s103 = scalar_lea.vmem %s0, %s102
          %s104 = sadd.s32 %s17, %s18
          %s105 = smul.u32 32, %s104
        $region20: #{tpu_custom_call.1} parent=15 // pred_fallthru
          _
      $region16: #{tpu_custom_call.1} parent=5 // pred_fallthru
        _
      %p106 = scmp.le.s32.totalorder 1, %s10
      %p107 = scmp.lt.s32.totalorder %s10, 3
      %p108 = pnand %p106, %p107
      %p109 = pneg %p108
      // Predicated region
      $region21: #{tpu_custom_call.1} parent=5 // pred_check
        _
      $region22: #{tpu_custom_call.1} parent=5 // pred_check_branch
        %111 = sbr.rel (%p108) target = $region24
      $region23: #{tpu_custom_call.1} parent=5 // pred_region
        %s112 = ssub.s32 %s10, 1
        %s113 = sadd.s32 %s19, %s20
        %s114 = smul.u32 32, %s113
        %p115 = scmp.lt.s32.totalorder %s114, 63
        %s116 = scalar_select %p115, %s114, 63
        %s117 = smul.addr %s116, 8
        %s118 = scalar_lea.vmem %s0, %s117
        %p119 = pneg %p50
        %p120 = pneg %p47
        %p121 = pneg %p76
        %p122 = pneg %p73
        %s123 = sand.u32 %s63, 1
        %s124 = scalar_lea.sflag [#allocation3], %s123
        %s125 = sand.u32 %s63, 1
        %s126 = smul.addr %s125, 2
        %s127 = scalar_lea.vmem [#allocation2], %s126
        %s128 = sadd.s32 %s19, %s20
        %s129 = smul.u32 32, %s128
        %p130 = scmp.lt.s32.totalorder %s129, 63
        %s131 = scalar_select %p130, %s129, 63
        %s132 = smul.addr %s131, 8
        %s133 = scalar_lea.vmem %s0, %s132
        %s134 = sadd.s32 %s19, %s20
        %s135 = smul.u32 32, %s134
        %p136 = scmp.eq.s32.totalorder %s20, 0
        // Predicated region
        $region25: #{tpu_custom_call.1} parent=23 // pred_check
          %p137 = pneg %p136
        $region26: #{tpu_custom_call.1} parent=23 // pred_check_branch
          %139 = sbr.rel (%p137) target = $region28
        $region27: #{tpu_custom_call.1} parent=23 // pred_region
          %vm140 = vcmask 58368
          %141 = vst.msk [vmem:[%s127] sm:$0x3] %vm140, 0.0
        $region28: #{tpu_custom_call.1} parent=23 // pred_fallthru
          _
        %v142 = vld [vmem:[%s133] sm:$0xff]
        %v143 = vld [vmem:[%s133 + $0x8] sm:$0xff]
        %v144 = vld [vmem:[%s133 + $0x10] sm:$0xff]
        %v145 = vld [vmem:[%s133 + $0x18] sm:$0xff]
        %v146 = vld [vmem:[%s133 + $0x20] sm:$0xff]
        %v147 = vld [vmem:[%s133 + $0x28] sm:$0xff]
        %v148 = vld [vmem:[%s133 + $0x30] sm:$0xff]
        %v149 = vld [vmem:[%s133 + $0x38] sm:$0xff]
        %v150 = vld [vmem:[%s133 + $0x40] sm:$0xff]
        %v151 = vld [vmem:[%s133 + $0x48] sm:$0xff]
        %v152 = vld [vmem:[%s133 + $0x50] sm:$0xff]
        %v153 = vld [vmem:[%s133 + $0x58] sm:$0xff]
        %v154 = vld [vmem:[%s133 + $0x60] sm:$0xff]
        %v155 = vld [vmem:[%s133 + $0x68] sm:$0xff]
        %v156 = vld [vmem:[%s133 + $0x70] sm:$0xff]
        %v157 = vld [vmem:[%s133 + $0x78] sm:$0xff]
        %v158 = vld [vmem:[%s133 + $0x80] sm:$0xff]
        %v159 = vld [vmem:[%s133 + $0x88] sm:$0xff]
        %v160 = vld [vmem:[%s133 + $0x90] sm:$0xff]
        %v161 = vld [vmem:[%s133 + $0x98] sm:$0xff]
        %v162 = vld [vmem:[%s133 + $0xa0] sm:$0xff]
        %v163 = vld [vmem:[%s133 + $0xa8] sm:$0xff]
        %v164 = vld [vmem:[%s133 + $0xb0] sm:$0xff]
        %v165 = vld [vmem:[%s133 + $0xb8] sm:$0xff]
        %v166 = vld [vmem:[%s133 + $0xc0] sm:$0xff]
        %v167 = vld [vmem:[%s133 + $0xc8] sm:$0xff]
        %v168 = vld [vmem:[%s133 + $0xd0] sm:$0xff]
        %v169 = vld [vmem:[%s133 + $0xd8] sm:$0xff]
        %v170 = vld [vmem:[%s133 + $0xe0] sm:$0xff]
        %v171 = vld [vmem:[%s133 + $0xe8] sm:$0xff]
        %v172 = vld [vmem:[%s133 + $0xf0] sm:$0xff]
        %v173 = vld [vmem:[%s133 + $0xf8] sm:$0xff]
        %vm174 = vcmask 64512
        %v175 = vsel %vm174, %v142, 0.0
        %v176 = vsel %vm174, %v143, 0.0
        %v177 = vadd.f32 %v175, %v176
        %v178 = vsel %vm174, %v144, 0.0
        %v179 = vadd.f32 %v177, %v178
        %v180 = vsel %vm174, %v145, 0.0
        %v181 = vadd.f32 %v179, %v180
        %v182 = vsel %vm174, %v146, 0.0
        %v183 = vadd.f32 %v181, %v182
        %v184 = vsel %vm174, %v147, 0.0
        %v185 = vadd.f32 %v183, %v184
        %v186 = vsel %vm174, %v148, 0.0
        %v187 = vadd.f32 %v185, %v186
        %v188 = vsel %vm174, %v149, 0.0
        %v189 = vadd.f32 %v187, %v188
        %v190 = vsel %vm174, %v150, 0.0
        %v191 = vadd.f32 %v189, %v190
        %v192 = vsel %vm174, %v151, 0.0
        %v193 = vadd.f32 %v191, %v192
        %v194 = vsel %vm174, %v152, 0.0
        %v195 = vadd.f32 %v193, %v194
        %v196 = vsel %vm174, %v153, 0.0
        %v197 = vadd.f32 %v195, %v196
        %v198 = vsel %vm174, %v154, 0.0
        %v199 = vadd.f32 %v197, %v198
        %v200 = vsel %vm174, %v155, 0.0
        %v201 = vadd.f32 %v199, %v200
        %v202 = vsel %vm174, %v156, 0.0
        %v203 = vadd.f32 %v201, %v202
        %v204 = vsel %vm174, %v157, 0.0
        %v205 = vadd.f32 %v203, %v204
        %v206 = vsel %vm174, %v158, 0.0
        %v207 = vadd.f32 %v205, %v206
        %v208 = vsel %vm174, %v159, 0.0
        %v209 = vadd.f32 %v207, %v208
        %v210 = vsel %vm174, %v160, 0.0
        %v211 = vadd.f32 %v209, %v210
        %v212 = vsel %vm174, %v161, 0.0
        %v213 = vadd.f32 %v211, %v212
        %v214 = vsel %vm174, %v162, 0.0
        %v215 = vadd.f32 %v213, %v214
        %v216 = vsel %vm174, %v163, 0.0
        %v217 = vadd.f32 %v215, %v216
        %v218 = vsel %vm174, %v164, 0.0
        %v219 = vadd.f32 %v217, %v218
        %v220 = vsel %vm174, %v165, 0.0
        %v221 = vadd.f32 %v219, %v220
        %v222 = vsel %vm174, %v166, 0.0
        %v223 = vadd.f32 %v221, %v222
        %v224 = vsel %vm174, %v167, 0.0
        %v225 = vadd.f32 %v223, %v224
        %v226 = vsel %vm174, %v168, 0.0
        %v227 = vadd.f32 %v225, %v226
        %v228 = vsel %vm174, %v169, 0.0
        %v229 = vadd.f32 %v227, %v228
        %v230 = vsel %vm174, %v170, 0.0
        %v231 = vadd.f32 %v229, %v230
        %v232 = vsel %vm174, %v171, 0.0
        %v233 = vadd.f32 %v231, %v232
        %v234 = vsel %vm174, %v172, 0.0
        %v235 = vadd.f32 %v233, %v234
        %v236 = vsel %vm174, %v173, 0.0
        %v237 = vadd.f32 %v235, %v236
        %v238 = vrot.slane %v237, 4
        %v239 = vadd.f32 %v237, %v238
        %v240 = vrot.slane %v239, 2
        %v241 = vadd.f32 %v239, %v240
        %v242 = vrot.slane %v241, 1
        %v243 = vadd.f32 %v241, %v242
        %v244 = vmul.f32 %v142, %v142
        %v245 = vmul.f32 %v143, %v143
        %v246 = vmul.f32 %v144, %v144
        %v247 = vmul.f32 %v145, %v145
        %v248 = vmul.f32 %v146, %v146
        %v249 = vmul.f32 %v147, %v147
        %v250 = vmul.f32 %v148, %v148
        %v251 = vmul.f32 %v149, %v149
        %v252 = vmul.f32 %v150, %v150
        %v253 = vmul.f32 %v151, %v151
        %v254 = vmul.f32 %v152, %v152
        %v255 = vmul.f32 %v153, %v153
        %v256 = vmul.f32 %v154, %v154
        %v257 = vmul.f32 %v155, %v155
        %v258 = vmul.f32 %v156, %v156
        %v259 = vmul.f32 %v157, %v157
        %v260 = vmul.f32 %v158, %v158
        %v261 = vmul.f32 %v159, %v159
        %v262 = vmul.f32 %v160, %v160
        %v263 = vmul.f32 %v161, %v161
        %v264 = vmul.f32 %v162, %v162
        %v265 = vmul.f32 %v163, %v163
        %v266 = vmul.f32 %v164, %v164
        %v267 = vmul.f32 %v165, %v165
        %v268 = vmul.f32 %v166, %v166
        %v269 = vmul.f32 %v167, %v167
        %v270 = vmul.f32 %v168, %v168
        %v271 = vmul.f32 %v169, %v169
        %v272 = vmul.f32 %v170, %v170
        %v273 = vmul.f32 %v171, %v171
        %v274 = vmul.f32 %v172, %v172
        %v275 = vmul.f32 %v173, %v173
        %v276 = vsel %vm174, %v244, 0.0
        %v277 = vsel %vm174, %v245, 0.0
        %v278 = vadd.f32 %v276, %v277
        %v279 = vsel %vm174, %v246, 0.0
        %v280 = vadd.f32 %v278, %v279
        %v281 = vsel %vm174, %v247, 0.0
        %v282 = vadd.f32 %v280, %v281
        %v283 = vsel %vm174, %v248, 0.0
        %v284 = vadd.f32 %v282, %v283
        %v285 = vsel %vm174, %v249, 0.0
        %v286 = vadd.f32 %v284, %v285
        %v287 = vsel %vm174, %v250, 0.0
        %v288 = vadd.f32 %v286, %v287
        %v289 = vsel %vm174, %v251, 0.0
        %v290 = vadd.f32 %v288, %v289
        %v291 = vsel %vm174, %v252, 0.0
        %v292 = vadd.f32 %v290, %v291
        %v293 = vsel %vm174, %v253, 0.0
        %v294 = vadd.f32 %v292, %v293
        %v295 = vsel %vm174, %v254, 0.0
        %v296 = vadd.f32 %v294, %v295
        %v297 = vsel %vm174, %v255, 0.0
        %v298 = vadd.f32 %v296, %v297
        %v299 = vsel %vm174, %v256, 0.0
        %v300 = vadd.f32 %v298, %v299
        %v301 = vsel %vm174, %v257, 0.0
        %v302 = vadd.f32 %v300, %v301
        %v303 = vsel %vm174, %v258, 0.0
        %v304 = vadd.f32 %v302, %v303
        %v305 = vsel %vm174, %v259, 0.0
        %v306 = vadd.f32 %v304, %v305
        %v307 = vsel %vm174, %v260, 0.0
        %v308 = vadd.f32 %v306, %v307
        %v309 = vsel %vm174, %v261, 0.0
        %v310 = vadd.f32 %v308, %v309
        %v311 = vsel %vm174, %v262, 0.0
        %v312 = vadd.f32 %v310, %v311
        %v313 = vsel %vm174, %v263, 0.0
        %v314 = vadd.f32 %v312, %v313
        %v315 = vsel %vm174, %v264, 0.0
        %v316 = vadd.f32 %v314, %v315
        %v317 = vsel %vm174, %v265, 0.0
        %v318 = vadd.f32 %v316, %v317
        %v319 = vsel %vm174, %v266, 0.0
        %v320 = vadd.f32 %v318, %v319
        %v321 = vsel %vm174, %v267, 0.0
        %v322 = vadd.f32 %v320, %v321
        %v323 = vsel %vm174, %v268, 0.0
        %v324 = vadd.f32 %v322, %v323
        %v325 = vsel %vm174, %v269, 0.0
        %v326 = vadd.f32 %v324, %v325
        %v327 = vsel %vm174, %v270, 0.0
        %v328 = vadd.f32 %v326, %v327
        %v329 = vsel %vm174, %v271, 0.0
        %v330 = vadd.f32 %v328, %v329
        %v331 = vsel %vm174, %v272, 0.0
        %v332 = vadd.f32 %v330, %v331
        %v333 = vsel %vm174, %v273, 0.0
        %v334 = vadd.f32 %v332, %v333
        %v335 = vsel %vm174, %v274, 0.0
        %v336 = vadd.f32 %v334, %v335
        %v337 = vsel %vm174, %v275, 0.0
        %v338 = vadd.f32 %v336, %v337
        %v339 = vrot.slane %v338, 4
        %v340 = vadd.f32 %v338, %v339
        %v341 = vrot.slane %v340, 2
        %v342 = vadd.f32 %v340, %v341
        %v343 = vrot.slane %v342, 1
        %v344 = vadd.f32 %v342, %v343
        %v345 = vld [vmem:[%s127] sm:$0x3]
        %vm346 = vcmask 1040384
        %v347 = vsel %vm346, %v243, %v344
        %v348 = vadd.f32 %v345, %v347
        %vm349 = vcmask 58368
        %350 = vst.msk [vmem:[%s127] sm:$0x3] %vm349, %v348
        %s351 = sand.u32 %s63, 1
        %s352 = scalar_lea.sflag [#allocation3], %s351
        %s353 = sand.u32 %s63, 1
        %s354 = smul.addr %s353, 2
        %s355 = scalar_lea.vmem [#allocation2], %s354
        // Predicated region
        $region29: #{tpu_custom_call.1} parent=23 // pred_check
          %p356 = pneg %p73
        $region30: #{tpu_custom_call.1} parent=23 // pred_check_branch
          %358 = sbr.rel (%p356) target = $region32
        $region31: #{tpu_custom_call.1} parent=23 // pred_region
          %s360 = ssub.s32 32, 32
          %361 = vsyncadd %s352, %s360
          %s362 = smul.addr %s19, 32
          %s363 = scalar_lea.hbm %s1, %s362
          %s365 = sshll.u32 %s355, 4
          %s366 = int_to_ptr.vmem [resolvable:$true] %s365
          %368 = dma.vmem_to_hbm [thread:$0]  %s366, 32, %s363, %s352
        $region32: #{tpu_custom_call.1} parent=23 // pred_fallthru
          _
      $region24: #{tpu_custom_call.1} parent=5 // pred_fallthru
        _
      %p369 = scmp.le.s32.totalorder 2, %s10
      // Predicated region
      $region33: #{tpu_custom_call.1} parent=5 // pred_check
        %p370 = pneg %p369
      $region34: #{tpu_custom_call.1} parent=5 // pred_check_branch
        %372 = sbr.rel (%p370) target = $region36
      $region35: #{tpu_custom_call.1} parent=5 // pred_region
        %s373 = ssub.s32 %s10, 2
        // Predicated region
        $region37: #{tpu_custom_call.1} parent=35 // pred_check
          %p374 = pneg %p79
        $region38: #{tpu_custom_call.1} parent=35 // pred_check_branch
          %376 = sbr.rel (%p374) target = $region40
        $region39: #{tpu_custom_call.1} parent=35 // pred_region
          %s377 = sand.u32 %s64, 1
          %s378 = scalar_lea.sflag [#allocation3], %s377
          %s379 = sand.u32 %s64, 1
          %s380 = smul.addr %s379, 2
          %s381 = scalar_lea.vmem [#allocation2], %s380
          %382 = dma.done %s378, 32
        $region40: #{tpu_custom_call.1} parent=35 // pred_fallthru
          _
      $region36: #{tpu_custom_call.1} parent=5 // pred_fallthru
        _
    $region6: #{tpu_custom_call.1} parent=1 // loop_footer
      %s14 = sadd.s32 1, %s10
    $region7: #{tpu_custom_call.1} parent=1 // loop_footer_branch
      %9 = sbr.rel target = $region3
    $region8: #{tpu_custom_call.1} parent=1 // loop_exit
      _
    %383 = vsyncpa [#allocation3], 1
    %s384 = scalar_lea.sflag [#allocation3], 1
    %385 = vsyncpa %s384, 1

</llo_original>
